<compile_context>
chip_gen: v6e
topology: v6e:2x2x1
jax: 0.10.0
libtpu: 0.0.40
codegen_flags: <defaults>
</compile_context>

<pallas_src>
import functools

import jax
import jax.numpy as jnp
from jax import lax
from jax.experimental import pallas as pl
from jax.experimental.pallas import tpu as pltpu


def _weighted_grid_loss_kernel(true_ref, pred_ref, o_ref, acc_mse, acc_tv, *,
                               tb, n_flat, width, n_batch, steps_per_split,
                               threshold, mask_tail, fold):
    i = pl.program_id(1)  # batch-step axis ("arbitrary"); axis 0 is the core split.

    @pl.when(i == 0)
    def _init():
        acc_mse[...] = jnp.zeros_like(acc_mse)
        acc_tv[...] = jnp.zeros_like(acc_tv)

    # Cast to f32 in-kernel (HBM traffic stays at the native dtype width).
    x = true_ref[...].astype(jnp.float32)   # (tb, H*W)
    p = pred_ref[...].astype(jnp.float32)   # (tb, H*W)

    if mask_tail:
        # Zero batch rows past B in the ragged tail block. Keep this a select:
        # the out-of-range region of the block is undefined and must not be
        # multiplied into the sums.
        gstep = pl.program_id(0) * steps_per_split + i
        row = lax.broadcasted_iota(jnp.int32, (tb, 1), 0)
        valid = (gstep * tb + row) < n_batch
        x = jnp.where(valid, x, 0.0)
        p = jnp.where(valid, p, 0.0)

    # ---- weighted pixelwise squared error ----
    err = x - p
    if threshold is not None:
        w = jnp.where(jnp.abs(x) > jnp.float32(threshold),
                      jnp.float32(10.0), jnp.float32(1.0))
        wse = w * (err * err)
    else:
        wse = err * err

    # ---- total variation: both diffs are lane rolls on the flattened axis ----
    # flat index i = h*W + w:
    #   horizontal neighbour -> i+1 (invalid on the last column)
    #   vertical   neighbour -> i+W (invalid on the last row)
    p_right = pltpu.roll(p, shift=n_flat - 1, axis=1)        # p[(i+1) % N]
    p_down = pltpu.roll(p, shift=n_flat - width, axis=1)     # p[(i+W) % N]
    col = lax.broadcasted_iota(jnp.int32, (1, n_flat), 1)
    h_valid = lax.rem(col + 1, width) != 0                   # not last column
    v_valid = col < (n_flat - width)                         # not last row
    tv = (jnp.where(h_valid, jnp.abs(p_right - p), 0.0)
          + jnp.where(v_valid, jnp.abs(p_down - p), 0.0))    # (tb, H*W)

    # ---- accumulate into small resident VMEM scratch ----
    if fold:
        # Layout-preserving fold of the batch rows (tb % 8 == 0): pure
        # major-axis VALU adds, accumulator stays (8, H*W).
        wse = wse.reshape(tb // 8, 8, n_flat).sum(axis=0)
        tv = tv.reshape(tb // 8, 8, n_flat).sum(axis=0)
    acc_mse[...] += wse
    acc_tv[...] += tv

    @pl.when(i == steps_per_split - 1)
    def _finalize():
        # The only cross-lane/sublane reductions in the kernel.
        mse_s = jnp.sum(acc_mse[...])
        tv_s = jnp.sum(acc_tv[...])
        r = lax.broadcasted_iota(jnp.int32, (8, 128), 0)
        c = lax.broadcasted_iota(jnp.int32, (8, 128), 1)
        tile = jnp.where((r == 0) & (c == 0), mse_s, jnp.float32(0.0))
        tile = jnp.where((r == 0) & (c == 1), tv_s, tile)
        o_ref[0] = tile                     # per-core partial sums at [0,0],[0,1]


def _vmem_budget():
    """(target bytes per f32 input block, vmem_limit_bytes), generation-aware."""
    cap = 64 * 1024 * 1024
    try:
        info = pltpu.get_tpu_info()
        cap = int(getattr(info, "vmem_capacity_bytes", cap))
    except Exception:
        pass
    if cap >= 96 * 1024 * 1024:
        # v5e / v6e class: 128 MiB physical VMEM.
        return 6 * 1024 * 1024, 80 * 1024 * 1024
    # v7x class: 64 MiB physical VMEM per TensorCore -- stay well inside it.
    return 4 * 1024 * 1024, 48 * 1024 * 1024


def _choose_tb(B, tb_target):
    """Pick a batch-block size: multiple of 8 (or == B), preferring divisors of
    B (no tail mask) and an even step count (clean 2-way TensorCore split)."""
    tb_target = int(max(1, min(B, tb_target)))
    if tb_target >= B:
        return B
    if tb_target < 8:
        return min(8, B)
    tb_target = (tb_target // 8) * 8
    lo = max(8, ((tb_target // 2) // 8) * 8)
    best = tb_target
    best_key = (0, int((-(-B // tb_target)) % 2 == 0), tb_target)
    for d in range(tb_target, lo - 1, -8):
        steps = -(-B // d)
        key = (int(B % d == 0), int(steps % 2 == 0), d)
        if key > best_key:
            best_key, best = key, d
    return best


def weighted_grid_loss(true, predicted, smoothness_weight=0.001,
                       extreme_value_threshold=1e-6, *, block_batch=None):
    """Pallas implementation of WeightedGridLoss.forward for (B, H, W) grids."""
    assert true.shape == predicted.shape
    assert true.ndim == 3, "WeightedGridLoss expects (batch, H, W) grids"
    B, H, W = true.shape
    N = H * W

    # Free row-major reshape: the 128-lane axis becomes H*W (lane-dense even
    # when W < 128). No data movement, dtype preserved.
    t2 = jnp.reshape(true, (B, N))
    p2 = jnp.reshape(predicted, (B, N))

    target_blk, vmem_limit = _vmem_budget()
    lane_n = ((N + 127) // 128) * 128
    row_bytes = lane_n * 4  # f32 footprint of one batch row in VMEM
    tb_target = max(1, target_blk // row_bytes) if block_batch is None else int(block_batch)
    tb = _choose_tb(B, tb_target)

    steps = -(-B // tb)
    mask_tail = (steps * tb != B)
    # 2-way split feeds both TensorCores on v7x; on 1-TC chips it is just an
    # outer loop of length 2. Only used when the step count splits evenly.
    num_splits = 2 if (steps >= 2 and steps % 2 == 0) else 1
    steps_per_split = steps // num_splits
    fold = (tb % 8 == 0)
    acc_rows = 8 if fold else tb

    kernel = functools.partial(
        _weighted_grid_loss_kernel,
        tb=tb, n_flat=N, width=W, n_batch=B, steps_per_split=steps_per_split,
        threshold=(None if extreme_value_threshold is None
                   else float(extreme_value_threshold)),
        mask_tail=mask_tail, fold=fold,
    )

    partials = pl.pallas_call(
        kernel,
        out_shape=jax.ShapeDtypeStruct((num_splits, 8, 128), jnp.float32),
        grid_spec=pltpu.PrefetchScalarGridSpec(
            num_scalar_prefetch=0,
            grid=(num_splits, steps_per_split),
            in_specs=[
                pl.BlockSpec((tb, N), lambda c, i: (c * steps_per_split + i, 0)),
                pl.BlockSpec((tb, N), lambda c, i: (c * steps_per_split + i, 0)),
            ],
            out_specs=pl.BlockSpec((1, 8, 128), lambda c, i: (c, 0, 0)),
            scratch_shapes=[
                pltpu.VMEM((acc_rows, N), jnp.float32),   # weighted-SE partials
                pltpu.VMEM((acc_rows, N), jnp.float32),   # merged TV partials
            ],
        ),
        compiler_params=pltpu.CompilerParams(
            dimension_semantics=("parallel", "arbitrary"),
            vmem_limit_bytes=vmem_limit,
        ),
    )(t2, p2)

    mse_sum = jnp.sum(partials[:, 0, 0])
    tv_sum = jnp.sum(partials[:, 0, 1])
    pixelwise_mse = mse_sum / jnp.float32(B * H * W)
    tvr = tv_sum / jnp.float32(B)
    return pixelwise_mse + jnp.float32(smoothness_weight) * tvr


def _reference(true, predicted, smoothness_weight=0.001,
               extreme_value_threshold=1e-6):
    true = true.astype(jnp.float32)
    predicted = predicted.astype(jnp.float32)
    if extreme_value_threshold is not None:
        weights = jnp.where(jnp.abs(true) > extreme_value_threshold, 10.0, 1.0)
    else:
        weights = jnp.ones_like(true)
    mse = jnp.mean(weights * (true - predicted) ** 2)
    hd = jnp.abs(jnp.diff(predicted, axis=2))
    vd = jnp.abs(jnp.diff(predicted, axis=1))
    tv = jnp.sum(hd, axis=(1, 2)) + jnp.sum(vd, axis=(1, 2))
    return mse + smoothness_weight * jnp.mean(tv)


if __name__ == "__main__":
    key = jax.random.PRNGKey(0)
    k1, k2, k3, k4, k5, k6 = jax.random.split(key, 6)

    # 1. Small single-block case (tb == B, no fold, no mask).
    t = jax.random.normal(k1, (2, 16, 16), dtype=jnp.float32)
    p = jax.random.normal(k2, (2, 16, 16), dtype=jnp.float32)
    out = jax.block_until_ready(weighted_grid_loss(t, p))
    ref = _reference(t, p)
    assert jnp.allclose(out, ref, rtol=1e-5, atol=1e-6), (out, ref)

    # 2. Multi-step with ragged tail: tb=8, 4 steps -> 2-way core split,
    #    folded (8, H*W) accumulators, in-kernel tail masking.
    t2 = jax.random.normal(k3, (28, 16, 16), dtype=jnp.float32)
    p2 = jax.random.normal(k4, (28, 16, 16), dtype=jnp.float32)
    out2 = jax.block_until_ready(weighted_grid_loss(t2, p2, block_batch=8))
    ref2 = _reference(t2, p2)
    assert jnp.allclose(out2, ref2, rtol=1e-5, atol=1e-6), (out2, ref2)

    # 3. Odd step count (single split), exact divisor (no tail mask).
    t3 = jax.random.normal(k5, (24, 16, 16), dtype=jnp.float32)
    p3 = jax.random.normal(k6, (24, 16, 16), dtype=jnp.float32)
    out3 = jax.block_until_ready(weighted_grid_loss(t3, p3, block_batch=8))
    ref3 = _reference(t3, p3)
    assert jnp.allclose(out3, ref3, rtol=1e-5, atol=1e-6), (out3, ref3)

    # 4. Native bf16 inputs: kept bf16 in HBM, cast to f32 inside the kernel.
    tb16 = t.astype(jnp.bfloat16)
    pb16 = p.astype(jnp.bfloat16)
    out4 = jax.block_until_ready(weighted_grid_loss(tb16, pb16))
    ref4 = _reference(tb16, pb16)
    assert jnp.allclose(out4, ref4, rtol=1e-5, atol=1e-6), (out4, ref4)

    print("KERNEL_OK")
</pallas_src>

<mosaic_0001>
module attributes {stable_mosaic.version = 11 : i64} {
  func.func @_weighted_grid_loss_kernel(%arg0: i32, %arg1: i32, %arg2: memref<2x256xf32, #tpu.memory_space<vmem>>, %arg3: memref<2x256xf32, #tpu.memory_space<vmem>>, %arg4: memref<1x8x128xf32, #tpu.memory_space<vmem>>, %arg5: memref<2x256xf32, #tpu.memory_space<vmem>>, %arg6: memref<2x256xf32, #tpu.memory_space<vmem>>) attributes {dimension_semantics = [#tpu.dimension_semantics<parallel>, #tpu.dimension_semantics<arbitrary>], iteration_bounds = array<i64: 1, 1>, scalar_prefetch = 0 : i64, scratch_operands = 2 : i64, tpu.core_type = #tpu.core_type<tc>, window_params = [{transform_indices = @transform_0, window_bounds = array<i64: 2, 256>}, {transform_indices = @transform_1, window_bounds = array<i64: 2, 256>}, {transform_indices = @transform_2, window_bounds = array<i64: 1, 8, 128>}]} {
    %c0_i32 = arith.constant 0 : i32
    %0 = arith.cmpi eq, %arg1, %c0_i32 : i32
    %1 = arith.extui %0 : i1 to i32
    %c0_i32_0 = arith.constant 0 : i32
    %2 = arith.cmpi ne, %1, %c0_i32_0 : i32
    scf.if %2 {
      %cst_20 = arith.constant 0.000000e+00 : f32
      %47 = vector.broadcast %cst_20 : f32 to vector<2x256xf32>
      %c0_21 = arith.constant 0 : index
      %c0_22 = arith.constant 0 : index
      %48 = vector.load %arg5[%c0_21, %c0_22] : memref<2x256xf32, #tpu.memory_space<vmem>>, vector<2x256xf32>
      tpu.vector_store %arg5[%c0_21, %c0_22], %47 {strides = array<i32>} : memref<2x256xf32, #tpu.memory_space<vmem>>, vector<2x256xf32>,
      %cst_23 = arith.constant 0.000000e+00 : f32
      %49 = vector.broadcast %cst_23 : f32 to vector<2x256xf32>
      %c0_24 = arith.constant 0 : index
      %c0_25 = arith.constant 0 : index
      %50 = vector.load %arg6[%c0_24, %c0_25] : memref<2x256xf32, #tpu.memory_space<vmem>>, vector<2x256xf32>
      tpu.vector_store %arg6[%c0_24, %c0_25], %49 {strides = array<i32>} : memref<2x256xf32, #tpu.memory_space<vmem>>, vector<2x256xf32>,
    } else {
    }
    %c0 = arith.constant 0 : index
    %c0_1 = arith.constant 0 : index
    %3 = vector.load %arg2[%c0, %c0_1] : memref<2x256xf32, #tpu.memory_space<vmem>>, vector<2x256xf32>
    %c0_2 = arith.constant 0 : index
    %c0_3 = arith.constant 0 : index
    %4 = vector.load %arg3[%c0_2, %c0_3] : memref<2x256xf32, #tpu.memory_space<vmem>>, vector<2x256xf32>
    %5 = arith.subf %3, %4 : vector<2x256xf32>
    %6 = math.absf %3 : vector<2x256xf32>
    %cst = arith.constant 9.99999997E-7 : f32
    %7 = vector.broadcast %cst : f32 to vector<2x256xf32>
    %8 = arith.cmpf ogt, %6, %7 : vector<2x256xf32>
    %cst_4 = arith.constant 1.000000e+01 : f32
    %cst_5 = arith.constant 1.000000e+00 : f32
    %9 = vector.broadcast %cst_4 : f32 to vector<2x256xf32>
    %10 = vector.broadcast %cst_5 : f32 to vector<2x256xf32>
    %11 = arith.select %8, %9, %10 : vector<2x256xi1>, vector<2x256xf32>
    %12 = arith.mulf %5, %5 : vector<2x256xf32>
    %13 = arith.mulf %11, %12 : vector<2x256xf32>
    %c255_i32 = arith.constant 255 : i32
    %14 = tpu.dynamic_rotate %4 by %c255_i32 dim 1 : vector<2x256xf32>, i32 -> vector<2x256xf32>
    %c240_i32 = arith.constant 240 : i32
    %15 = tpu.dynamic_rotate %4 by %c240_i32 dim 1 : vector<2x256xf32>, i32 -> vector<2x256xf32>
    %16 = tpu.iota {dimensions = array<i32: 1>} : vector<1x256xi32>
    %c1_i32 = arith.constant 1 : i32
    %17 = vector.broadcast %c1_i32 : i32 to vector<1x256xi32>
    %18 = arith.addi %16, %17 : vector<1x256xi32>
    %c16_i32 = arith.constant 16 : i32
    %19 = vector.broadcast %c16_i32 : i32 to vector<1x256xi32>
    %20 = arith.remsi %18, %19 : vector<1x256xi32>
    %c0_i32_6 = arith.constant 0 : i32
    %21 = vector.broadcast %c0_i32_6 : i32 to vector<1x256xi32>
    %22 = arith.cmpi ne, %20, %21 : vector<1x256xi32>
    %c240_i32_7 = arith.constant 240 : i32
    %23 = vector.broadcast %c240_i32_7 : i32 to vector<1x256xi32>
    %24 = arith.cmpi slt, %16, %23 : vector<1x256xi32>
    %25 = arith.subf %14, %4 : vector<2x256xf32>
    %26 = math.absf %25 : vector<2x256xf32>
    %cst_8 = arith.constant 0.000000e+00 : f32
    %27 = vector.shape_cast %22 : vector<1x256xi1> to vector<1x256xi1>
    %28 = vector.broadcast %27 : vector<1x256xi1> to vector<2x256xi1>
    %29 = vector.broadcast %cst_8 : f32 to vector<2x256xf32>
    %30 = arith.select %28, %26, %29 : vector<2x256xi1>, vector<2x256xf32>
    %31 = arith.subf %15, %4 : vector<2x256xf32>
    %32 = math.absf %31 : vector<2x256xf32>
    %cst_9 = arith.constant 0.000000e+00 : f32
    %33 = vector.shape_cast %24 : vector<1x256xi1> to vector<1x256xi1>
    %34 = vector.broadcast %33 : vector<1x256xi1> to vector<2x256xi1>
    %35 = vector.broadcast %cst_9 : f32 to vector<2x256xf32>
    %36 = arith.select %34, %32, %35 : vector<2x256xi1>, vector<2x256xf32>
    %37 = arith.addf %30, %36 : vector<2x256xf32>
    %c0_10 = arith.constant 0 : index
    %c0_11 = arith.constant 0 : index
    %38 = vector.load %arg5[%c0_10, %c0_11] : memref<2x256xf32, #tpu.memory_space<vmem>>, vector<2x256xf32>
    %39 = arith.addf %38, %13 : vector<2x256xf32>
    %c0_12 = arith.constant 0 : index
    %c0_13 = arith.constant 0 : index
    %40 = vector.load %arg5[%c0_12, %c0_13] : memref<2x256xf32, #tpu.memory_space<vmem>>, vector<2x256xf32>
    tpu.vector_store %arg5[%c0_12, %c0_13], %39 {strides = array<i32>} : memref<2x256xf32, #tpu.memory_space<vmem>>, vector<2x256xf32>,
    %c0_14 = arith.constant 0 : index
    %c0_15 = arith.constant 0 : index
    %41 = vector.load %arg6[%c0_14, %c0_15] : memref<2x256xf32, #tpu.memory_space<vmem>>, vector<2x256xf32>
    %42 = arith.addf %41, %37 : vector<2x256xf32>
    %c0_16 = arith.constant 0 : index
    %c0_17 = arith.constant 0 : index
    %43 = vector.load %arg6[%c0_16, %c0_17] : memref<2x256xf32, #tpu.memory_space<vmem>>, vector<2x256xf32>
    tpu.vector_store %arg6[%c0_16, %c0_17], %42 {strides = array<i32>} : memref<2x256xf32, #tpu.memory_space<vmem>>, vector<2x256xf32>,
    %c0_i32_18 = arith.constant 0 : i32
    %44 = arith.cmpi eq, %arg1, %c0_i32_18 : i32
    %45 = arith.extui %44 : i1 to i32
    %c0_i32_19 = arith.constant 0 : i32
    %46 = arith.cmpi ne, %45, %c0_i32_19 : i32
    scf.if %46 {
      %c0_20 = arith.constant 0 : index
      %c0_21 = arith.constant 0 : index
      %47 = vector.load %arg5[%c0_20, %c0_21] : memref<2x256xf32, #tpu.memory_space<vmem>>, vector<2x256xf32>
      %48 = vector.shape_cast %47 : vector<2x256xf32> to vector<1x2x256xf32>
      %cst_22 = arith.constant dense<0.000000e+00> : vector<1xf32>
      %49 = vector.multi_reduction <add>, %48, %cst_22 [1, 2] : vector<1x2x256xf32> to vector<1xf32>
      %50 = vector.shape_cast %49 : vector<1xf32> to vector<1x1x1xf32>
      %51 = vector.extract %50[0, 0, 0] : f32 from vector<1x1x1xf32>
      %c0_23 = arith.constant 0 : index
      %c0_24 = arith.constant 0 : index
      %52 = vector.load %arg6[%c0_23, %c0_24] : memref<2x256xf32, #tpu.memory_space<vmem>>, vector<2x256xf32>
      %53 = vector.shape_cast %52 : vector<2x256xf32> to vector<1x2x256xf32>
      %cst_25 = arith.constant dense<0.000000e+00> : vector<1xf32>
      %54 = vector.multi_reduction <add>, %53, %cst_25 [1, 2] : vector<1x2x256xf32> to vector<1xf32>
      %55 = vector.shape_cast %54 : vector<1xf32> to vector<1x1x1xf32>
      %56 = vector.extract %55[0, 0, 0] : f32 from vector<1x1x1xf32>
      %57 = tpu.iota {dimensions = array<i32: 0>} : vector<8x128xi32>
      %58 = tpu.iota {dimensions = array<i32: 1>} : vector<8x128xi32>
      %c0_i32_26 = arith.constant 0 : i32
      %59 = vector.broadcast %c0_i32_26 : i32 to vector<8x128xi32>
      %60 = arith.cmpi eq, %57, %59 : vector<8x128xi32>
      %c0_i32_27 = arith.constant 0 : i32
      %61 = vector.broadcast %c0_i32_27 : i32 to vector<8x128xi32>
      %62 = arith.cmpi eq, %58, %61 : vector<8x128xi32>
      %63 = arith.andi %60, %62 : vector<8x128xi1>
      %cst_28 = arith.constant 0.000000e+00 : f32
      %64 = vector.broadcast %51 : f32 to vector<8x128xf32>
      %65 = vector.broadcast %cst_28 : f32 to vector<8x128xf32>
      %66 = arith.select %63, %64, %65 : vector<8x128xi1>, vector<8x128xf32>
      %c0_i32_29 = arith.constant 0 : i32
      %67 = vector.broadcast %c0_i32_29 : i32 to vector<8x128xi32>
      %68 = arith.cmpi eq, %57, %67 : vector<8x128xi32>
      %c1_i32_30 = arith.constant 1 : i32
      %69 = vector.broadcast %c1_i32_30 : i32 to vector<8x128xi32>
      %70 = arith.cmpi eq, %58, %69 : vector<8x128xi32>
      %71 = arith.andi %68, %70 : vector<8x128xi1>
      %72 = vector.broadcast %56 : f32 to vector<8x128xf32>
      %73 = arith.select %71, %72, %66 : vector<8x128xi1>, vector<8x128xf32>
      %c0_31 = arith.constant 0 : index
      %c0_32 = arith.constant 0 : index
      %c0_33 = arith.constant 0 : index
      %74 = vector.load %arg4[%c0_31, %c0_32, %c0_33] : memref<1x8x128xf32, #tpu.memory_space<vmem>>, vector<1x8x128xf32>
      %75 = vector.shape_cast %74 : vector<1x8x128xf32> to vector<8x128xf32>
      %76 = vector.shape_cast %73 : vector<8x128xf32> to vector<1x8x128xf32>
      tpu.vector_store %arg4[%c0_31, %c0_32, %c0_33], %76 {strides = array<i32>} : memref<1x8x128xf32, #tpu.memory_space<vmem>>, vector<1x8x128xf32>,
    } else {
    }
    return
  }
  func.func @transform_0(%arg0: i32, %arg1: i32) -> (i32, i32) {
    %c1_i32 = arith.constant 1 : i32
    %0 = arith.muli %arg0, %c1_i32 : i32
    %1 = arith.addi %0, %arg1 : i32
    %c0_i32 = arith.constant 0 : i32
    %c0_i32_0 = arith.constant 0 : i32
    return %1, %c0_i32 : i32, i32
  }
  func.func @transform_1(%arg0: i32, %arg1: i32) -> (i32, i32) {
    %c1_i32 = arith.constant 1 : i32
    %0 = arith.muli %arg0, %c1_i32 : i32
    %1 = arith.addi %0, %arg1 : i32
    %c0_i32 = arith.constant 0 : i32
    %c0_i32_0 = arith.constant 0 : i32
    return %1, %c0_i32 : i32, i32
  }
  func.func @transform_2(%arg0: i32, %arg1: i32) -> (i32, i32, i32) {
    %c0_i32 = arith.constant 0 : i32
    %c0_i32_0 = arith.constant 0 : i32
    %c0_i32_1 = arith.constant 0 : i32
    return %arg0, %c0_i32, %c0_i32_0 : i32, i32, i32
  }
}

</mosaic_0001>

<llo_original>
// kernel: tpu_custom_call.1
$region0: #{tpu_custom_call.1}
  #allocation0 [shape = 'u32[]', space=smem, size = 0x4, offset = 0x4, fixed_abs, tag = 'smem constant byte address 0x4 - core index']
  #allocation1 [shape = 'u32[144,128]{1,0:T(1,128)}', space=vmem, size = 0x12000, scoped, tag = 'internal scratch']
  #allocation2 [shape = 'f32[2,256]{1,0:T(2,128)}', space=vmem, size = 0x800, scoped, tag = 'scratch operand']
  #allocation3 [shape = 'f32[2,256]{1,0:T(2,128)}', space=vmem, size = 0x800, scoped, tag = 'scratch operand']
  %s0 = inlined_call_operand.hbm [shape: f32[2,256], index: 0, kind: input, shape index: {}]
  %s1 = inlined_call_operand.hbm [shape: f32[2,256], index: 1, kind: input, shape index: {}]
  %s2 = inlined_call_operand.hbm [shape: f32[1,8,128], index: 2, kind: output, shape index: {}]
  %s3 = sld [smem:[#allocation0]]
  $region34: #{tpu_custom_call.1} parent=0
    _
  %s5 = ssub.s32 1, %s3
  %s6 = scalar_select 0, %s5, %s3
  $region1: #{tpu_custom_call.1} parent=0
    #allocation4 [shape = 'u8[2048]{0}', space=vmem, size = 0x800, scoped, tag = 'input window, operand 0, single buffered']
    #allocation5 [shape = 's32[1]{0}', space=sflag, size = 0x4, scoped, tag = 'scoped memory for tpu_custom_call.1']
    #allocation6 [shape = 's32[1]{0}', space=sflag, size = 0x4, scoped, tag = 'scoped memory for tpu_custom_call.1']
    #allocation7 [shape = 'u8[2048]{0}', space=vmem, size = 0x800, scoped, tag = 'input window, operand 1, single buffered']
    #allocation8 [shape = 's32[1]{0}', space=sflag, size = 0x4, scoped, tag = 'scoped memory for tpu_custom_call.1']
    #allocation9 [shape = 'u8[4096]{0}', space=vmem, size = 0x1000, scoped, tag = 'output window, operand 0, single buffered']
    %7 = vsyncpa [#allocation5], 0
    %8 = vsyncpa [#allocation8], 0
    %9 = vsyncpa [#allocation6], 0
    // Predicated region
    $region2: #{tpu_custom_call.1} parent=1 // pred_check
      _
    $region3: #{tpu_custom_call.1} parent=1 // pred_check_branch
      %11 = sbr.rel (0) target = $region5
    $region4: #{tpu_custom_call.1} parent=1 // pred_region
      %s12 = sadd.s32 0, 0
      %s14 = ssub.s32 64, 64
      %15 = vsyncadd [#allocation5], %s14
      %s16 = smul.addr %s12, 2
      %s17 = smul.addr %s16, 32
      %s18 = scalar_lea.hbm %s0, %s17
      %s20 = sshll.u32 [#allocation4], 4
      %s21 = int_to_ptr.vmem [resolvable:$true] %s20
      %23 = dma.hbm_to_vmem [thread:$0]  %s18, 64, %s21, [#allocation5]
    $region5: #{tpu_custom_call.1} parent=1 // pred_fallthru
      _
    // Predicated region
    $region6: #{tpu_custom_call.1} parent=1 // pred_check
      _
    $region7: #{tpu_custom_call.1} parent=1 // pred_check_branch
      %25 = sbr.rel (0) target = $region9
    $region8: #{tpu_custom_call.1} parent=1 // pred_region
      %s26 = sadd.s32 0, 0
      %s28 = ssub.s32 64, 64
      %29 = vsyncadd [#allocation8], %s28
      %s30 = smul.addr %s26, 2
      %s31 = smul.addr %s30, 32
      %s32 = scalar_lea.hbm %s1, %s31
      %s34 = sshll.u32 [#allocation7], 4
      %s35 = int_to_ptr.vmem [resolvable:$true] %s34
      %37 = dma.hbm_to_vmem [thread:$0]  %s32, 64, %s35, [#allocation8]
    $region9: #{tpu_custom_call.1} parent=1 // pred_fallthru
      _
    // Predicated region
    $region10: #{tpu_custom_call.1} parent=1 // pred_check
      _
    $region11: #{tpu_custom_call.1} parent=1 // pred_check_branch
      %39 = sbr.rel (0) target = $region13
    $region12: #{tpu_custom_call.1} parent=1 // pred_region
      %40 = dma.done [#allocation5], 64
    $region13: #{tpu_custom_call.1} parent=1 // pred_fallthru
      _
    // Predicated region
    $region14: #{tpu_custom_call.1} parent=1 // pred_check
      _
    $region15: #{tpu_custom_call.1} parent=1 // pred_check_branch
      %42 = sbr.rel (0) target = $region17
    $region16: #{tpu_custom_call.1} parent=1 // pred_region
      %43 = dma.done [#allocation8], 64
    $region17: #{tpu_custom_call.1} parent=1 // pred_fallthru
      _
    %s44 = sadd.s32 0, 0
    %s45 = sadd.s32 0, 0
    %p46 = scmp.eq.s32.totalorder 0, 0
    // Predicated region
    $region18: #{tpu_custom_call.1} parent=1 // pred_check
      %p47 = pneg %p46
    $region19: #{tpu_custom_call.1} parent=1 // pred_check_branch
      %49 = sbr.rel (%p47) target = $region21
    $region20: #{tpu_custom_call.1} parent=1 // pred_region
      %50 = vst [vmem:[#allocation2] sm:$0xf] 0.0
      %51 = vst [vmem:[#allocation3] sm:$0xf] 0.0
    $region21: #{tpu_custom_call.1} parent=1 // pred_fallthru
      _
    %v52 = vld [vmem:[#allocation4] sm:$0xf]
    %v53 = vld [vmem:[#allocation7] sm:$0xf]
    %v54 = vsub.f32 %v52, %v53
    %v55 = vand.u32 2147483647, %v52
    %vm56 = vcmp.gt.f32.partialorder %v55, 1e-06
    %v57 = vsel %vm56, 10.0, 1.0
    %v58 = vmul.f32 %v54, %v54
    %v59 = vmul.f32 %v57, %v58
    %v62 = vunpack.c.l.s4 1983009808
    %v63 = vunpack.c.0.s8 %v62
    %v64 = vlaneseq
    %v65 = vshrl.u32 %v64, 7
    %v66 = vsub.s32 %v63, %v65
    %v67 = vrot.slane %v53, %v66
    %v68 = vcombine.high %v67, %v67
    %71 = vrot.lane.b32.xlu0 %v67, 127
    %v72 = vpop.permute.xlu0 %71
    %73 = vrot.lane.b32.xlu0 %v68, 127
    %v74 = vpop.permute.xlu0 %73
    %v75 = vlaneseq
    %v76 = vand.u32 %v75, 127
    %vm77 = vcmp.lt.s32.totalorder %v76, 127
    %v78 = vsel %vm77, %v72, %v74
    %v79 = vsel %vm77, %v74, %v72
    %80 = vrot.lane.b32.xlu0 %v67, 112
    %v81 = vpop.permute.xlu0 %80
    %82 = vrot.lane.b32.xlu0 %v68, 112
    %v83 = vpop.permute.xlu0 %82
    %vm84 = vcmp.lt.s32.totalorder %v76, 112
    %v85 = vsel %vm84, %v81, %v83
    %v86 = vsel %vm84, %v83, %v81
    %v87 = vadd.s32 %v76, 128
    %v88 = vadd.s32 %v76, 1
    %v89 = vadd.s32 %v87, 1
    %vm90 = vcmp.lt.s32.totalorder %v88, 0
    %v91 = vsub.s32 0, %v88
    %v92 = vsel %vm90, %v91, %v88
    %v93 = vshrl.u32 %v92, 4
    %v94 = vand.u32 %v92, 15
    %v95 = vsub.s32 0, %v94
    %v96 = vsel %vm90, %v95, %v94
    %vm97 = vcmp.lt.s32.totalorder %v89, 0
    %v98 = vsub.s32 0, %v89
    %v99 = vsel %vm97, %v98, %v89
    %v100 = vshrl.u32 %v99, 4
    %v101 = vand.u32 %v99, 15
    %v102 = vsub.s32 0, %v101
    %v103 = vsel %vm97, %v102, %v101
    %vm104 = vcmp.ne.s32.totalorder %v96, 0
    %vm105 = vcmp.ne.s32.totalorder %v103, 0
    %vm106 = vcmp.lt.s32.totalorder %v76, 240
    %vm107 = vcmp.lt.s32.totalorder %v87, 240
    %v108 = vsub.f32 %v78, %v67
    %v109 = vsub.f32 %v79, %v68
    %v110 = vand.u32 2147483647, %v108
    %v111 = vand.u32 2147483647, %v109
    %v112 = vsel %vm104, 1, 0
    %v113 = vsel %vm105, 1, 0
    %vm114 = vcmp.eq.s32.totalorder %v112, 1
    %vm115 = vcmp.eq.s32.totalorder %v113, 1
    %v116 = vsel %vm114, %v110, 0.0
    %v117 = vsel %vm115, %v111, 0.0
    %v118 = vsub.f32 %v85, %v67
    %v119 = vsub.f32 %v86, %v68
    %v120 = vand.u32 2147483647, %v118
    %v121 = vand.u32 2147483647, %v119
    %v122 = vsel %vm106, 1, 0
    %v123 = vsel %vm107, 1, 0
    %vm124 = vcmp.eq.s32.totalorder %v122, 1
    %vm125 = vcmp.eq.s32.totalorder %v123, 1
    %v126 = vsel %vm124, %v120, 0.0
    %v127 = vsel %vm125, %v121, 0.0
    %v128 = vadd.f32 %v116, %v126
    %v129 = vadd.f32 %v117, %v127
    %v130 = vld [vmem:[#allocation2] sm:$0xf]
    %v131 = vadd.f32 %v130, %v59
    %132 = vst [vmem:[#allocation2] sm:$0xf] %v131
    %v133 = vld [vmem:[#allocation3] sm:$0xf]
    %v136 = vcombine.low %v128, %v129
    %v138 = vunpack.c.l.s4 1983009808
    %v139 = vunpack.c.0.s8 %v138
    %v140 = vlaneseq
    %v141 = vshrl.u32 %v140, 7
    %v142 = vsub.s32 %v139, %v141
    %v143 = vrot.slane %v136, %v142
    %v145 = vadd.f32 %v133, %v143
    %146 = vst [vmem:[#allocation3] sm:$0xf] %v145
    // Predicated region
    $region22: #{tpu_custom_call.1} parent=1 // pred_check
      %p147 = pneg %p46
    $region23: #{tpu_custom_call.1} parent=1 // pred_check_branch
      %149 = sbr.rel (%p147) target = $region25
    $region24: #{tpu_custom_call.1} parent=1 // pred_region
      %v150 = vld [vmem:[#allocation2] sm:$0xf]
      %v153 = vunpack.c.l.s4 1983009808
      %v154 = vunpack.c.0.s8 %v153
      %v155 = vlaneseq
      %v156 = vshrl.u32 %v155, 7
      %v157 = vsub.s32 %v154, %v156
      %v158 = vrot.slane %v150, %v157
      %v159 = vcombine.high %v158, %v158
      %vm162 = vcmask 1041408
      %v163 = vsel %vm162, %v158, 0.0
      %v164 = vsel %vm162, %v159, 0.0
      %v165 = vadd.f32 %v163, %v164
      %166 = vadd.xlane.f32.xlu0 %v165
      %v167 = vpop.xlane.xlu0 %166
      %v168 = vrot.slane %v167, 4
      %v169 = vadd.f32 %v167, %v168
      %v170 = vrot.slane %v169, 2
      %v171 = vadd.f32 %v169, %v170
      %v172 = vrot.slane %v171, 1
      %v173 = vadd.f32 %v171, %v172
      %s174 = vtos %v173
      %v175 = vld [vmem:[#allocation3] sm:$0xf]
      %v178 = vunpack.c.l.s4 1983009808
      %v179 = vunpack.c.0.s8 %v178
      %v180 = vlaneseq
      %v181 = vshrl.u32 %v180, 7
      %v182 = vsub.s32 %v179, %v181
      %v183 = vrot.slane %v175, %v182
      %v184 = vcombine.high %v183, %v183
      %v187 = vsel %vm162, %v183, 0.0
      %v188 = vsel %vm162, %v184, 0.0
      %v189 = vadd.f32 %v187, %v188
      %190 = vadd.xlane.f32.xlu0 %v189
      %v191 = vpop.xlane.xlu0 %190
      %v192 = vrot.slane %v191, 4
      %v193 = vadd.f32 %v191, %v192
      %v194 = vrot.slane %v193, 2
      %v195 = vadd.f32 %v193, %v194
      %v196 = vrot.slane %v195, 1
      %v197 = vadd.f32 %v195, %v196
      %s198 = vtos %v197
      %v199 = vlaneseq
      %v200 = vshrl.u32 %v199, 7
      %vm201 = vcmp.eq.s32.totalorder %v200, 0
      %vm202 = vcmp.eq.s32.totalorder %v76, 0
      %vm203 = vmand %vm201, %vm202
      %v204 = vstv %s174
      %v205 = vsel %vm203, %v204, 0.0
      %vm206 = vcmp.eq.s32.totalorder %v76, 1
      %vm207 = vmand %vm201, %vm206
      %v208 = vstv %s198
      %v209 = vsel %vm207, %v208, %v205
      %210 = vst [vmem:[#allocation9] sm:$0xff] %v209
    $region25: #{tpu_custom_call.1} parent=1 // pred_fallthru
      _
    // Predicated region
    $region26: #{tpu_custom_call.1} parent=1 // pred_check
      _
    $region27: #{tpu_custom_call.1} parent=1 // pred_check_branch
      %212 = sbr.rel (0) target = $region29
    $region28: #{tpu_custom_call.1} parent=1 // pred_region
      %s214 = ssub.s32 128, 128
      %215 = vsyncadd [#allocation6], %s214
      %s217 = sshll.u32 [#allocation9], 4
      %s218 = int_to_ptr.vmem [resolvable:$true] %s217
      %220 = dma.vmem_to_hbm [thread:$0]  %s218, 128, %s2, [#allocation6]
    $region29: #{tpu_custom_call.1} parent=1 // pred_fallthru
      _
    // Predicated region
    $region30: #{tpu_custom_call.1} parent=1 // pred_check
      _
    $region31: #{tpu_custom_call.1} parent=1 // pred_check_branch
      %222 = sbr.rel (0) target = $region33
    $region32: #{tpu_custom_call.1} parent=1 // pred_region
      %223 = dma.done [#allocation6], 128
    $region33: #{tpu_custom_call.1} parent=1 // pred_fallthru
      _
    %224 = vsyncpa [#allocation5], 1
    %225 = vsyncpa [#allocation8], 1
    %226 = vsyncpa [#allocation6], 1

</llo_original>
